<compile_context>
chip_gen: v7x
topology: tpu7x:2x2x1
jax: 0.10.0
libtpu: 0.0.40
codegen_flags: <defaults>
</compile_context>

<pallas_src>
import jax
import jax.numpy as jnp
from jax.experimental import pallas as pl
from jax.experimental.pallas import tpu as pltpu


# --------------------------------------------------------------------------
# Parameter setup / glue (plain JAX)
# --------------------------------------------------------------------------
def binarize_pattern(coded_weight):
    """Normal_BinarizeF.forward: 1 where w > 0 else 0, then force a 1 at the
    argmax over the t axis (dim=1) for every (c, i, j)."""
    bw = (coded_weight > 0).astype(coded_weight.dtype)
    am = jnp.argmax(coded_weight, axis=1)  # (c, s, s)
    onehot = jax.nn.one_hot(am, coded_weight.shape[1],
                            dtype=coded_weight.dtype, axis=1)  # (c, t, s, s)
    return jnp.maximum(bw, onehot)


def make_coded_layer_params(key, t=8, c=1, s=2, init_v=0.03, repeat=14):
    """Deterministic stand-in for CodedLayer.__init__ (uniform(-init_v, init_v)).

    Returns:
      binary_weight: (c, t, H, W)  binary exposure pattern (exact 0/1 values)
      exposed:       (c, 1, H, W)  per-pixel count of exposed frames
      inv_exposed:   (c, 1, H, W)  1 / max(exposed, 1)  (multiplied after the sum,
                                   same order as the PyTorch reference)
    """
    coded_weight = jax.random.uniform(
        key, (c, t, s, s), minval=-init_v, maxval=init_v, dtype=jnp.float32)
    binary_small = binarize_pattern(coded_weight)                   # (c, t, s, s)
    binary_weight = jnp.tile(binary_small, (1, 1, repeat, repeat))  # (c, t, H, W)
    exposed = jnp.sum(binary_weight, axis=1, keepdims=True)         # (c, 1, H, W)
    exposed_safe = jnp.where(exposed == 0, jnp.ones_like(exposed), exposed)
    inv_exposed = 1.0 / exposed_safe
    return binary_weight, exposed, inv_exposed
    # TODO(synk): sparse_random_pattern branch and init_pattern_path loading are not
    # materialized (sparse_random=False / no file I/O allowed); straight-through
    # backward of Normal_BinarizeF is a training-time concern and out of scope.


# --------------------------------------------------------------------------
# Pallas kernel: masked sum over t, then multiply by 1/exposed
# --------------------------------------------------------------------------
def coded_kernel(x_ref, w_ref, inv_ref, o_ref):
    # x_ref:   (tb, t, hw)   tb batch rows of one channel; t on sublanes, hw on lanes
    # w_ref:   (t, hw)       binary exposure pattern for this channel (resident)
    # inv_ref: (1, hw)       1 / max(exposed, 1) for this channel (resident)
    # o_ref:   (tb, hw)      coded (temporally compressed) frames, sublane/lane dense
    x = x_ref[...]
    w = w_ref[...]
    acc = jnp.sum(x * w[None, :, :], axis=1)          # sublane reduce over t
    o_ref[...] = (acc * inv_ref[...]).astype(o_ref.dtype)


# --------------------------------------------------------------------------
# Tiling policy
# --------------------------------------------------------------------------
def _choose_tb(B, t, hw, itemsize,
               target_block_bytes=2 * 1024 * 1024, min_steps=8):
    """Batch-tile size: x block ~target bytes, keep >= min_steps batch grid steps
    when B allows, and make tb a multiple of 8 (or == B) so the output block
    (tb, hw) uses full (8,128) tiles (unmasked stores)."""
    hw_pad = ((hw + 127) // 128) * 128           # lane padding
    t_pad = ((t + 7) // 8) * 8                   # sublane padding
    per_row = t_pad * hw_pad * itemsize          # padded bytes of one batch row of x
    tb = max(1, target_block_bytes // per_row)
    # keep enough steps along the batch grid for pipelining / megacore sharding
    tb = min(tb, max(1, (B + min_steps - 1) // min_steps))
    if B <= 8:
        return B                                 # single full-extent block (layout-legal)
    tb = max(8, (tb // 8) * 8)                   # multiple of 8 for sublane-dense output
    return min(tb, (B // 8) * 8)


# --------------------------------------------------------------------------
# Wrapper: pallas_call
# --------------------------------------------------------------------------
def coded_layer_forward(x, binary_weight, inv_exposed):
    """x: (B, c, t, H, W) -> out: (B, c, 1, H, W); same semantics as
    CodedLayer.forward (opt_pattern=True path)."""
    B, c, t, H, W = x.shape
    assert binary_weight.shape == (c, t, H, W)
    assert inv_exposed.shape == (c, 1, H, W)
    hw = H * W
    itemsize = jnp.dtype(x.dtype).itemsize

    # Lane-dense layout: flatten H*W onto the lane axis (contiguous, free reshape).
    x_flat = x.reshape(B, c, t, hw)
    w_flat = binary_weight.reshape(c, t, hw)
    inv_flat = inv_exposed.reshape(c, 1, hw)

    tb = _choose_tb(B, t, hw, itemsize)
    nb = pl.cdiv(B, tb)                          # ragged last block is fine (row-independent)
    grid = (c, nb)                               # channel outer, batch inner: the weight
                                                 # block index is constant along the inner
                                                 # axis -> stays resident in VMEM.

    # Padding-aware working-set estimate (double-buffered), used only to set the
    # scoped-VMEM limit with headroom; blocks are small on every generation.
    hw_pad = ((hw + 127) // 128) * 128
    t_pad = ((t + 7) // 8) * 8
    tb_pad = ((tb + 7) // 8) * 8
    x_bytes = 2 * tb * t_pad * hw_pad * itemsize
    w_bytes = 2 * t_pad * hw_pad * itemsize
    inv_bytes = 2 * 8 * hw_pad * itemsize
    o_bytes = 2 * tb_pad * hw_pad * itemsize
    vmem_need = x_bytes + w_bytes + inv_bytes + o_bytes
    vmem_limit = int(min(128 * 1024 * 1024, max(16 * 1024 * 1024, 2 * vmem_need)))

    bytes_accessed = (B * c * t * hw + c * t * hw + c * hw + B * c * hw) * itemsize

    out = pl.pallas_call(
        coded_kernel,
        out_shape=jax.ShapeDtypeStruct((c, B, hw), x.dtype),
        grid_spec=pl.GridSpec(
            grid=grid,
            in_specs=[
                # x: squeeze channel dim; t on sublanes, hw on lanes.
                pl.BlockSpec((tb, None, t, hw), lambda ci, bi: (bi, ci, 0, 0)),
                # binary mask: one channel, resident across the inner batch axis.
                pl.BlockSpec((None, t, hw), lambda ci, bi: (ci, 0, 0)),
                # 1/exposed: one channel, resident.
                pl.BlockSpec((None, 1, hw), lambda ci, bi: (ci, 0, 0)),
            ],
            # Sublane/lane-dense output block (tb multiple of 8 or == B).
            out_specs=pl.BlockSpec((None, tb, hw), lambda ci, bi: (ci, bi, 0)),
        ),
        compiler_params=pltpu.CompilerParams(
            dimension_semantics=("parallel", "parallel"),
            vmem_limit_bytes=vmem_limit,
        ),
        cost_estimate=pl.CostEstimate(
            flops=2 * B * c * t * hw + B * c * hw,
            transcendentals=0,
            bytes_accessed=bytes_accessed,
        ),
    )(x_flat, w_flat, inv_flat)

    # (c, B, hw) -> (B, c, 1, H, W). For c == 1 this is effectively a reshape.
    return jnp.transpose(out, (1, 0, 2)).reshape(B, c, 1, H, W)


# --------------------------------------------------------------------------
# Demo / self-check
# --------------------------------------------------------------------------
def _reference(x, binary_weight, exposed):
    """Pure-JAX reference of the PyTorch forward (sum, then multiply by 1/exposed)."""
    bw = binary_weight[None]                         # (1, c, t, H, W)
    ref = (x * bw).sum(axis=2, keepdims=True)        # (B, c, 1, H, W)
    en = exposed[None]
    en = jnp.where(en == 0, jnp.ones_like(en), en)
    return ref * (1.0 / en)


if __name__ == "__main__":
    key = jax.random.PRNGKey(0)

    # Small configs consistent with the module: s=2 base pattern repeated 14x14
    # spatially (hardcoded in forward) -> 28x28.  Second config exercises multiple
    # channels and a ragged last batch block (B=10, tb=8).
    configs = [
        dict(B=2, c=1, t=8, s=2, repeat=14),
        dict(B=10, c=2, t=8, s=2, repeat=14),
    ]

    for cfg in configs:
        B, c, t, s, repeat = cfg["B"], cfg["c"], cfg["t"], cfg["s"], cfg["repeat"]
        H = W = s * repeat

        key, k_w, k_x = jax.random.split(key, 3)
        binary_weight, exposed, inv_exposed = make_coded_layer_params(
            k_w, t=t, c=c, s=s, init_v=0.03, repeat=repeat)
        x = jax.random.normal(k_x, (B, c, t, H, W), dtype=jnp.float32)

        out = coded_layer_forward(x, binary_weight, inv_exposed)
        out = jax.block_until_ready(out)

        ref = _reference(x, binary_weight, exposed)
        assert out.shape == (B, c, 1, H, W)
        assert jnp.allclose(out, ref, atol=1e-5, rtol=1e-5)

    print("KERNEL_OK")
</pallas_src>

<mosaic_0001>
module attributes {stable_mosaic.version = 11 : i64} {
  func.func @coded_kernel(%arg0: i32, %arg1: i32, %arg2: memref<2x1x8x784xf32, #tpu.memory_space<vmem>>, %arg3: memref<1x8x784xf32, #tpu.memory_space<vmem>>, %arg4: memref<1x1x784xf32, #tpu.memory_space<vmem>>, %arg5: memref<1x2x784xf32, #tpu.memory_space<vmem>>) attributes {dimension_semantics = [#tpu.dimension_semantics<parallel>, #tpu.dimension_semantics<parallel>], iteration_bounds = array<i64: 1, 1>, scalar_prefetch = 0 : i64, scratch_operands = 0 : i64, tpu.core_type = #tpu.core_type<tc>, window_params = [{transform_indices = @transform_0, window_bounds = array<i64: 2, 1, 8, 784>}, {transform_indices = @transform_1, window_bounds = array<i64: 1, 8, 784>}, {transform_indices = @transform_2, window_bounds = array<i64: 1, 1, 784>}, {transform_indices = @transform_3, window_bounds = array<i64: 1, 2, 784>}]} {
    %c0 = arith.constant 0 : index
    %c0_0 = arith.constant 0 : index
    %c0_1 = arith.constant 0 : index
    %c0_2 = arith.constant 0 : index
    %0 = vector.load %arg2[%c0, %c0_0, %c0_1, %c0_2] : memref<2x1x8x784xf32, #tpu.memory_space<vmem>>, vector<2x1x8x784xf32>
    %1 = vector.shape_cast %0 : vector<2x1x8x784xf32> to vector<2x8x784xf32>
    %c0_3 = arith.constant 0 : index
    %c0_4 = arith.constant 0 : index
    %c0_5 = arith.constant 0 : index
    %2 = vector.load %arg3[%c0_3, %c0_4, %c0_5] : memref<1x8x784xf32, #tpu.memory_space<vmem>>, vector<1x8x784xf32>
    %3 = vector.shape_cast %2 : vector<1x8x784xf32> to vector<8x784xf32>
    %4 = vector.shape_cast %3 : vector<8x784xf32> to vector<1x8x784xf32>
    %5 = vector.broadcast %4 : vector<1x8x784xf32> to vector<2x8x784xf32>
    %6 = arith.mulf %1, %5 : vector<2x8x784xf32>
    %cst = arith.constant dense<0.000000e+00> : vector<2x784xf32>
    %7 = vector.multi_reduction <add>, %6, %cst [1] : vector<2x8x784xf32> to vector<2x784xf32>
    %c0_6 = arith.constant 0 : index
    %c0_7 = arith.constant 0 : index
    %c0_8 = arith.constant 0 : index
    %8 = vector.load %arg4[%c0_6, %c0_7, %c0_8] : memref<1x1x784xf32, #tpu.memory_space<vmem>>, vector<1x1x784xf32>
    %9 = vector.shape_cast %8 : vector<1x1x784xf32> to vector<1x784xf32>
    %10 = vector.broadcast %9 : vector<1x784xf32> to vector<2x784xf32>
    %11 = arith.mulf %7, %10 : vector<2x784xf32>
    %c0_9 = arith.constant 0 : index
    %c0_10 = arith.constant 0 : index
    %c0_11 = arith.constant 0 : index
    %12 = vector.load %arg5[%c0_9, %c0_10, %c0_11] : memref<1x2x784xf32, #tpu.memory_space<vmem>>, vector<1x2x784xf32>
    %13 = vector.shape_cast %12 : vector<1x2x784xf32> to vector<2x784xf32>
    %14 = vector.shape_cast %11 : vector<2x784xf32> to vector<1x2x784xf32>
    tpu.vector_store %arg5[%c0_9, %c0_10, %c0_11], %14 {strides = array<i32>} : memref<1x2x784xf32, #tpu.memory_space<vmem>>, vector<1x2x784xf32>,
    return
  }
  func.func @transform_0(%arg0: i32, %arg1: i32) -> (i32, i32, i32, i32) {
    %c0_i32 = arith.constant 0 : i32
    %c0_i32_0 = arith.constant 0 : i32
    %c0_i32_1 = arith.constant 0 : i32
    return %arg1, %arg0, %c0_i32, %c0_i32_0 : i32, i32, i32, i32
  }
  func.func @transform_1(%arg0: i32, %arg1: i32) -> (i32, i32, i32) {
    %c0_i32 = arith.constant 0 : i32
    %c0_i32_0 = arith.constant 0 : i32
    %c0_i32_1 = arith.constant 0 : i32
    return %arg0, %c0_i32, %c0_i32_0 : i32, i32, i32
  }
  func.func @transform_2(%arg0: i32, %arg1: i32) -> (i32, i32, i32) {
    %c0_i32 = arith.constant 0 : i32
    %c0_i32_0 = arith.constant 0 : i32
    %c0_i32_1 = arith.constant 0 : i32
    return %arg0, %c0_i32, %c0_i32_0 : i32, i32, i32
  }
  func.func @transform_3(%arg0: i32, %arg1: i32) -> (i32, i32, i32) {
    %c0_i32 = arith.constant 0 : i32
    %c0_i32_0 = arith.constant 0 : i32
    return %arg0, %arg1, %c0_i32 : i32, i32, i32
  }
}

</mosaic_0001>

<llo_original>
// kernel: tpu_custom_call.1
$region0: #{tpu_custom_call.1}
  #allocation0 [shape = 'u32[]', space=smem, size = 0x4, offset = 0x4, fixed_abs, tag = 'smem constant byte address 0x4 - core index']
  #allocation1 [shape = 'u32[144,128]{1,0:T(1,128)}', space=vmem, size = 0x12000, scoped, tag = 'internal scratch']
  %s0 = inlined_call_operand.hbm [shape: f32[2,1,8,784], index: 0, kind: input, shape index: {}]
  %s1 = inlined_call_operand.hbm [shape: f32[1,8,784], index: 1, kind: input, shape index: {}]
  %s2 = inlined_call_operand.vmem [shape: f32[1,1,784], index: 2, kind: input, shape index: {}]
  %s3 = inlined_call_operand.hbm [shape: f32[1,2,784], index: 3, kind: output, shape index: {}]
  %s4 = sld [smem:[#allocation0]]
  $region30: #{tpu_custom_call.1} parent=0
    _
  %s6 = ssub.s32 1, %s4
  %s7 = scalar_select 0, %s6, %s4
  $region1: #{tpu_custom_call.1} parent=0
    #allocation2 [shape = 'u8[57344]{0}', space=vmem, size = 0xe000, scoped, tag = 'input window, operand 0, single buffered']
    #allocation3 [shape = 's32[1]{0}', space=sflag, size = 0x4, scoped, tag = 'scoped memory for tpu_custom_call.1']
    #allocation4 [shape = 's32[1]{0}', space=sflag, size = 0x4, scoped, tag = 'scoped memory for tpu_custom_call.1']
    #allocation5 [shape = 'u8[28672]{0}', space=vmem, size = 0x7000, scoped, tag = 'input window, operand 1, single buffered']
    #allocation6 [shape = 's32[1]{0}', space=sflag, size = 0x4, scoped, tag = 'scoped memory for tpu_custom_call.1']
    #allocation7 [shape = 'u8[7168]{0}', space=vmem, size = 0x1c00, scoped, tag = 'output window, operand 0, single buffered']
    %8 = vsyncpa [#allocation3], 0
    %9 = vsyncpa [#allocation6], 0
    %10 = vsyncpa [#allocation4], 0
    // Predicated region
    $region2: #{tpu_custom_call.1} parent=1 // pred_check
      _
    $region3: #{tpu_custom_call.1} parent=1 // pred_check_branch
      %12 = sbr.rel (0) target = $region5
    $region4: #{tpu_custom_call.1} parent=1 // pred_region
      %s14 = ssub.s32 1792, 1792
      %15 = vsyncadd [#allocation3], %s14
      %s16 = sshll.u32 [#allocation2], 4
      %s17 = int_to_ptr.vmem [resolvable:$true] %s16
      %22 = dma.hbm_to_vmem [thread:$0]  %s0, 1792, %s17, [#allocation3], 896, 896, 56
    $region5: #{tpu_custom_call.1} parent=1 // pred_fallthru
      _
    // Predicated region
    $region6: #{tpu_custom_call.1} parent=1 // pred_check
      _
    $region7: #{tpu_custom_call.1} parent=1 // pred_check_branch
      %24 = sbr.rel (0) target = $region9
    $region8: #{tpu_custom_call.1} parent=1 // pred_region
      %s26 = ssub.s32 896, 896
      %27 = vsyncadd [#allocation6], %s26
      %s29 = sshll.u32 [#allocation5], 4
      %s30 = int_to_ptr.vmem [resolvable:$true] %s29
      %32 = dma.hbm_to_vmem [thread:$0]  %s1, 896, %s30, [#allocation6]
    $region9: #{tpu_custom_call.1} parent=1 // pred_fallthru
      _
    // Predicated region
    $region10: #{tpu_custom_call.1} parent=1 // pred_check
      _
    $region11: #{tpu_custom_call.1} parent=1 // pred_check_branch
      %34 = sbr.rel (0) target = $region13
    $region12: #{tpu_custom_call.1} parent=1 // pred_region
      _
    $region13: #{tpu_custom_call.1} parent=1 // pred_fallthru
      _
    // Predicated region
    $region14: #{tpu_custom_call.1} parent=1 // pred_check
      _
    $region15: #{tpu_custom_call.1} parent=1 // pred_check_branch
      %36 = sbr.rel (0) target = $region17
    $region16: #{tpu_custom_call.1} parent=1 // pred_region
      %37 = dma.done [#allocation3], 1792
    $region17: #{tpu_custom_call.1} parent=1 // pred_fallthru
      _
    // Predicated region
    $region18: #{tpu_custom_call.1} parent=1 // pred_check
      _
    $region19: #{tpu_custom_call.1} parent=1 // pred_check_branch
      %39 = sbr.rel (0) target = $region21
    $region20: #{tpu_custom_call.1} parent=1 // pred_region
      %40 = dma.done [#allocation6], 896
    $region21: #{tpu_custom_call.1} parent=1 // pred_fallthru
      _
    %v41 = vld [vmem:[#allocation2] sm:$0xff]
    %v42 = vld [vmem:[#allocation2 + $0x8] sm:$0xff]
    %v43 = vld [vmem:[#allocation2 + $0x10] sm:$0xff]
    %v44 = vld [vmem:[#allocation2 + $0x18] sm:$0xff]
    %v45 = vld [vmem:[#allocation2 + $0x20] sm:$0xff]
    %v46 = vld [vmem:[#allocation2 + $0x28] sm:$0xff]
    %v47 = vld [vmem:[#allocation2 + $0x30] sm:$0xff]
    %v48 = vld [vmem:[#allocation2 + $0x38] sm:$0xff]
    %v49 = vld [vmem:[#allocation2 + $0x40] sm:$0xff]
    %v50 = vld [vmem:[#allocation2 + $0x48] sm:$0xff]
    %v51 = vld [vmem:[#allocation2 + $0x50] sm:$0xff]
    %v52 = vld [vmem:[#allocation2 + $0x58] sm:$0xff]
    %v53 = vld [vmem:[#allocation2 + $0x60] sm:$0xff]
    %v54 = vld [vmem:[#allocation2 + $0x68] sm:$0xff]
    %v55 = vld [vmem:[#allocation5] sm:$0xff]
    %v56 = vld [vmem:[#allocation5 + $0x8] sm:$0xff]
    %v57 = vld [vmem:[#allocation5 + $0x10] sm:$0xff]
    %v58 = vld [vmem:[#allocation5 + $0x18] sm:$0xff]
    %v59 = vld [vmem:[#allocation5 + $0x20] sm:$0xff]
    %v60 = vld [vmem:[#allocation5 + $0x28] sm:$0xff]
    %v61 = vld [vmem:[#allocation5 + $0x30] sm:$0xff]
    %v62 = vmul.f32 %v41, %v55
    %v63 = vmul.f32 %v42, %v56
    %v64 = vmul.f32 %v43, %v57
    %v65 = vmul.f32 %v44, %v58
    %v66 = vmul.f32 %v45, %v59
    %v67 = vmul.f32 %v46, %v60
    %v68 = vmul.f32 %v47, %v61
    %v69 = vmul.f32 %v48, %v55
    %v70 = vmul.f32 %v49, %v56
    %v71 = vmul.f32 %v50, %v57
    %v72 = vmul.f32 %v51, %v58
    %v73 = vmul.f32 %v52, %v59
    %v74 = vmul.f32 %v53, %v60
    %v75 = vmul.f32 %v54, %v61
    %v76 = vrot.slane %v62, 4
    %v77 = vadd.f32 %v62, %v76
    %v78 = vrot.slane %v77, 2
    %v79 = vadd.f32 %v77, %v78
    %v80 = vrot.slane %v79, 1
    %v81 = vadd.f32 %v79, %v80
    %v82 = vrot.slane %v63, 4
    %v83 = vadd.f32 %v63, %v82
    %v84 = vrot.slane %v83, 2
    %v85 = vadd.f32 %v83, %v84
    %v86 = vrot.slane %v85, 1
    %v87 = vadd.f32 %v85, %v86
    %v88 = vrot.slane %v64, 4
    %v89 = vadd.f32 %v64, %v88
    %v90 = vrot.slane %v89, 2
    %v91 = vadd.f32 %v89, %v90
    %v92 = vrot.slane %v91, 1
    %v93 = vadd.f32 %v91, %v92
    %v94 = vrot.slane %v65, 4
    %v95 = vadd.f32 %v65, %v94
    %v96 = vrot.slane %v95, 2
    %v97 = vadd.f32 %v95, %v96
    %v98 = vrot.slane %v97, 1
    %v99 = vadd.f32 %v97, %v98
    %v100 = vrot.slane %v66, 4
    %v101 = vadd.f32 %v66, %v100
    %v102 = vrot.slane %v101, 2
    %v103 = vadd.f32 %v101, %v102
    %v104 = vrot.slane %v103, 1
    %v105 = vadd.f32 %v103, %v104
    %v106 = vrot.slane %v67, 4
    %v107 = vadd.f32 %v67, %v106
    %v108 = vrot.slane %v107, 2
    %v109 = vadd.f32 %v107, %v108
    %v110 = vrot.slane %v109, 1
    %v111 = vadd.f32 %v109, %v110
    %vm112 = vcmask 130048
    %v113 = vsel %vm112, %v68, 0.0
    %v114 = vrot.slane %v113, 4
    %v115 = vadd.f32 %v113, %v114
    %v116 = vrot.slane %v115, 2
    %v117 = vadd.f32 %v115, %v116
    %v118 = vrot.slane %v117, 1
    %v119 = vadd.f32 %v117, %v118
    %v120 = vrot.slane %v69, 4
    %v121 = vadd.f32 %v69, %v120
    %v122 = vrot.slane %v121, 2
    %v123 = vadd.f32 %v121, %v122
    %v124 = vrot.slane %v123, 1
    %v125 = vadd.f32 %v123, %v124
    %v126 = vrot.slane %v70, 4
    %v127 = vadd.f32 %v70, %v126
    %v128 = vrot.slane %v127, 2
    %v129 = vadd.f32 %v127, %v128
    %v130 = vrot.slane %v129, 1
    %v131 = vadd.f32 %v129, %v130
    %v132 = vrot.slane %v71, 4
    %v133 = vadd.f32 %v71, %v132
    %v134 = vrot.slane %v133, 2
    %v135 = vadd.f32 %v133, %v134
    %v136 = vrot.slane %v135, 1
    %v137 = vadd.f32 %v135, %v136
    %v138 = vrot.slane %v72, 4
    %v139 = vadd.f32 %v72, %v138
    %v140 = vrot.slane %v139, 2
    %v141 = vadd.f32 %v139, %v140
    %v142 = vrot.slane %v141, 1
    %v143 = vadd.f32 %v141, %v142
    %v144 = vrot.slane %v73, 4
    %v145 = vadd.f32 %v73, %v144
    %v146 = vrot.slane %v145, 2
    %v147 = vadd.f32 %v145, %v146
    %v148 = vrot.slane %v147, 1
    %v149 = vadd.f32 %v147, %v148
    %v150 = vrot.slane %v74, 4
    %v151 = vadd.f32 %v74, %v150
    %v152 = vrot.slane %v151, 2
    %v153 = vadd.f32 %v151, %v152
    %v154 = vrot.slane %v153, 1
    %v155 = vadd.f32 %v153, %v154
    %v156 = vsel %vm112, %v75, 0.0
    %v157 = vrot.slane %v156, 4
    %v158 = vadd.f32 %v156, %v157
    %v159 = vrot.slane %v158, 2
    %v160 = vadd.f32 %v158, %v159
    %v161 = vrot.slane %v160, 1
    %v162 = vadd.f32 %v160, %v161
    %v163 = vld [vmem:[%s2] sm:$0x7f]
    %v165 = vlaneseq
    %v166 = vshrl.u32 %v165, 7
    %v167 = vsub.s32 0, %v166
    %v168 = vrot.slane %v163, %v167
    %v169 = vlaneseq
    %v170 = vshrl.u32 %v169, 7
    %v171 = vsub.s32 1, %v170
    %v172 = vrot.slane %v163, %v171
    %v173 = vlaneseq
    %v174 = vshrl.u32 %v173, 7
    %v175 = vsub.s32 2, %v174
    %v176 = vrot.slane %v163, %v175
    %v177 = vlaneseq
    %v178 = vshrl.u32 %v177, 7
    %v179 = vsub.s32 3, %v178
    %v180 = vrot.slane %v163, %v179
    %v181 = vlaneseq
    %v182 = vshrl.u32 %v181, 7
    %v183 = vsub.s32 4, %v182
    %v184 = vrot.slane %v163, %v183
    %v185 = vlaneseq
    %v186 = vshrl.u32 %v185, 7
    %v187 = vsub.s32 5, %v186
    %v188 = vrot.slane %v163, %v187
    %v189 = vlaneseq
    %v190 = vshrl.u32 %v189, 7
    %v191 = vsub.s32 6, %v190
    %v192 = vrot.slane %v163, %v191
    %v200 = vmul.f32 %v81, %v168
    %v201 = vmul.f32 %v87, %v172
    %v202 = vmul.f32 %v93, %v176
    %v203 = vmul.f32 %v99, %v180
    %v204 = vmul.f32 %v105, %v184
    %v205 = vmul.f32 %v111, %v188
    %v206 = vmul.f32 %v119, %v192
    %v207 = vmul.f32 %v125, %v168
    %v208 = vmul.f32 %v131, %v172
    %v209 = vmul.f32 %v137, %v176
    %v210 = vmul.f32 %v143, %v180
    %v211 = vmul.f32 %v149, %v184
    %v212 = vmul.f32 %v155, %v188
    %v213 = vmul.f32 %v162, %v192
    %v228 = vcombine.low %v200, %v201
    %v229 = vcombine.low %v202, %v203
    %v231 = vunpack.c.l.s4 1983009808
    %v232 = vunpack.c.0.s8 %v231
    %v233 = vlaneseq
    %v234 = vshrl.u32 %v233, 7
    %v235 = vsub.s32 %v232, %v234
    %v236 = vrot.slane %v228, %v235
    %v238 = vunpack.c.l.s4 1983009808
    %v239 = vunpack.c.0.s8 %v238
    %v240 = vlaneseq
    %v241 = vshrl.u32 %v240, 7
    %v242 = vsub.s32 %v239, %v241
    %v243 = vrot.slane %v229, %v242
    %v244 = vcombine.low %v236, %v243
    %v245 = vcombine.low %v204, %v205
    %v247 = vunpack.c.l.s4 1983009808
    %v248 = vunpack.c.0.s8 %v247
    %v249 = vlaneseq
    %v250 = vshrl.u32 %v249, 7
    %v251 = vsub.s32 %v248, %v250
    %v252 = vrot.slane %v245, %v251
    %v254 = vunpack.c.l.s4 1983009808
    %v255 = vunpack.c.0.s8 %v254
    %v256 = vlaneseq
    %v257 = vshrl.u32 %v256, 7
    %v258 = vsub.s32 %v255, %v257
    %v259 = vrot.slane %v206, %v258
    %v260 = vcombine.low %v252, %v259
    %v261 = vcombine.low %v207, %v208
    %v262 = vcombine.low %v209, %v210
    %v264 = vunpack.c.l.s4 1983009808
    %v265 = vunpack.c.0.s8 %v264
    %v266 = vlaneseq
    %v267 = vshrl.u32 %v266, 7
    %v268 = vsub.s32 %v265, %v267
    %v269 = vrot.slane %v261, %v268
    %v271 = vunpack.c.l.s4 1983009808
    %v272 = vunpack.c.0.s8 %v271
    %v273 = vlaneseq
    %v274 = vshrl.u32 %v273, 7
    %v275 = vsub.s32 %v272, %v274
    %v276 = vrot.slane %v262, %v275
    %v277 = vcombine.low %v269, %v276
    %v278 = vcombine.low %v211, %v212
    %v280 = vunpack.c.l.s4 1983009808
    %v281 = vunpack.c.0.s8 %v280
    %v282 = vlaneseq
    %v283 = vshrl.u32 %v282, 7
    %v284 = vsub.s32 %v281, %v283
    %v285 = vrot.slane %v278, %v284
    %v287 = vunpack.c.l.s4 1983009808
    %v288 = vunpack.c.0.s8 %v287
    %v289 = vlaneseq
    %v290 = vshrl.u32 %v289, 7
    %v291 = vsub.s32 %v288, %v290
    %v292 = vrot.slane %v213, %v291
    %v293 = vcombine.low %v285, %v292
    %vm294 = vcmask 1044484
    %v295 = vsel %vm294, %v244, %v244
    %vm296 = vcmask 1046534
    %v297 = vsel %vm296, %v244, %v295
    %v298 = vrot.slane %v277, 7
    %vm299 = vcmask 1041409
    %v300 = vsel %vm299, %v298, %v297
    %vm301 = vcmask 1043459
    %v302 = vsel %vm301, %v298, %v300
    %vm303 = vcmask 1045509
    %v304 = vsel %vm303, %v298, %v302
    %vm305 = vcmask 1047559
    %v306 = vsel %vm305, %v298, %v304
    %v307 = vsel %vm294, %v260, %v260
    %v308 = vsel %vm296, %v260, %v307
    %v309 = vrot.slane %v293, 7
    %v310 = vsel %vm299, %v309, %v308
    %v311 = vsel %vm301, %v309, %v310
    %v312 = vsel %vm303, %v309, %v311
    %v313 = vsel %vm305, %v309, %v312
    %316 = vst [vmem:[#allocation7] sm:$0xff] %v306
    %vm317 = vcmask 1041408
    %vm318 = vcmask 1043458
    %vm319 = vmor %vm318, %vm317
    %vm320 = vcmask 128004
    %vm321 = vmor %vm320, %vm319
    %322 = vst.msk [vmem:[#allocation7 + $0x8] sm:$0x3f] %vm321, %v313
    // Predicated region
    $region22: #{tpu_custom_call.1} parent=1 // pred_check
      _
    $region23: #{tpu_custom_call.1} parent=1 // pred_check_branch
      %324 = sbr.rel (0) target = $region25
    $region24: #{tpu_custom_call.1} parent=1 // pred_region
      %s326 = ssub.s32 224, 224
      %327 = vsyncadd [#allocation4], %s326
      %s329 = sshll.u32 [#allocation7], 4
      %s330 = int_to_ptr.vmem [resolvable:$true] %s329
      %332 = dma.vmem_to_hbm [thread:$0]  %s330, 224, %s3, [#allocation4]
    $region25: #{tpu_custom_call.1} parent=1 // pred_fallthru
      _
    // Predicated region
    $region26: #{tpu_custom_call.1} parent=1 // pred_check
      _
    $region27: #{tpu_custom_call.1} parent=1 // pred_check_branch
      %334 = sbr.rel (0) target = $region29
    $region28: #{tpu_custom_call.1} parent=1 // pred_region
      %335 = dma.done [#allocation4], 224
    $region29: #{tpu_custom_call.1} parent=1 // pred_fallthru
      _
    %336 = vsyncpa [#allocation3], 1
    %337 = vsyncpa [#allocation6], 1
    %338 = vsyncpa [#allocation4], 1

</llo_original>
